<compile_context>
chip_gen: v5e
topology: v5e:2x2
jax: 0.10.0
libtpu: 0.0.40
codegen_flags: <defaults>
</compile_context>

<pallas_src>
import functools

import jax
import jax.numpy as jnp
from jax.experimental import pallas as pl
from jax.experimental.pallas import tpu as pltpu


def _wlsce_kernel(x_ref, tgt_ref, w_ref, out_ref, acc_ref, *,
                  smoothing, confidence, total_n, tile_b, tiles_per_split,
                  use_weight, native_gather):
    i = pl.program_id(0)          # split index (parallel across TCs on v7x)
    j = pl.program_id(1)          # batch tile within split (sequential)

    @pl.when(j == 0)
    def _():
        acc_ref[...] = jnp.zeros_like(acc_ref)

    x_raw = x_ref[...]                                       # (TB, C) native dtype
    num_classes = x_raw.shape[-1]

    tgt = tgt_ref[...]                                       # (TB, 1) int32
    col = jax.lax.broadcasted_iota(jnp.int32, x_raw.shape, 1)
    onehot = col == tgt                                      # (TB, C) bool

    # Row max + one-hot gather of x[target]: exact in the input dtype, so run
    # them pre-upcast on bf16-capable VPUs (v6e/v7x); exp/lse stays in f32.
    if native_gather:
        m = jnp.max(x_raw, axis=-1, keepdims=True).astype(jnp.float32)
        x_t = jnp.sum(jnp.where(onehot, x_raw, jnp.zeros((), x_raw.dtype)),
                      axis=-1, keepdims=True).astype(jnp.float32)
        x32 = x_raw.astype(jnp.float32)
    else:
        x32 = x_raw.astype(jnp.float32)
        m = jnp.max(x32, axis=-1, keepdims=True)
        x_t = jnp.sum(jnp.where(onehot, x32, 0.0), axis=-1, keepdims=True)

    # TODO(synk): for very large C (100k+ vocab), tile the class axis with an
    # online (running-max, rescaled-sum) logsumexp instead of one (TB, C) block.
    sum_exp = jnp.sum(jnp.exp(x32 - m), axis=-1, keepdims=True)       # (TB, 1)
    lse = m + jnp.log(sum_exp)                                        # (TB, 1)
    mean_x = jnp.sum(x32, axis=-1, keepdims=True) * jnp.float32(1.0 / num_classes)

    # confidence*(lse - x[t]) + smoothing*(lse - mean(x))
    #   == lse - confidence*x[t] - smoothing*mean(x)     (conf + smooth == 1)
    loss = lse - jnp.float32(confidence) * x_t - jnp.float32(smoothing) * mean_x

    if use_weight:
        w_row = w_ref[...].astype(jnp.float32)               # (1, C) resident
        w_t = jnp.sum(jnp.where(onehot, w_row, 0.0), axis=-1, keepdims=True)
        loss = loss * w_t                                    # (TB, 1)

    # Mask rows past the true batch size (logits are NOT padded host-side, so
    # trailing-block rows may hold garbage — the select discards them exactly).
    row = jax.lax.broadcasted_iota(jnp.int32, (tile_b, 1), 0)
    global_row = (i * tiles_per_split + j) * tile_b + row
    loss = jnp.where(global_row < total_n, loss, 0.0)

    # Per-step sublane reduce into a single (1, 1) scalar accumulator.
    acc_ref[...] += jnp.sum(loss, axis=0, keepdims=True)

    @pl.when(j == pl.num_programs(1) - 1)
    def _():
        out_ref[...] = acc_ref[...][None, :, :]              # (1, 1, 1)


def _device_kind():
    try:
        return jax.devices()[0].device_kind.lower()
    except Exception:
        return ""


def weighted_label_smoothing_cross_entropy(x, target, weight=None,
                                           smoothing=0.1, *,
                                           num_splits=None,
                                           target_tile_bytes=None,
                                           max_tile_b=8192,
                                           vmem_limit_bytes=None):
    """x: (N, C) float logits; target: (N,) int; weight: (C,) float or None."""
    N, C = x.shape
    confidence = 1.0 - smoothing
    use_weight = weight is not None

    kind = _device_kind()
    is_v7 = "v7" in kind
    if num_splits is None:
        num_splits = 2 if is_v7 else 1          # 2 TCs on v7x; 1 on v5e/v6e
    if target_tile_bytes is None:
        # Budget by the f32 working set (C*4 B/row): small tiles for v7x's
        # 64 MiB VMEM/TC, large tiles for v5e/v6e's 128 MiB.
        target_tile_bytes = (3 << 20) if is_v7 else (8 << 20)
    if vmem_limit_bytes is None:
        vmem_limit_bytes = (40 << 20) if is_v7 else (64 << 20)
    # bf16 max/select pre-upcast only pays (and is guaranteed native) on v6e/v7x.
    native_gather = (x.dtype == jnp.bfloat16) and ("v6" in kind or is_v7)

    if weight is None:
        weight = jnp.ones((C,), jnp.float32)    # tiny, unread when use_weight=False
    weight2d = weight.reshape(1, C).astype(jnp.float32)
    target2d = target.reshape(N, 1).astype(jnp.int32)

    # Tile sizing: f32 working-set bytes per row, sublane-aligned.
    rows_by_bytes = max(8, (target_tile_bytes // max(1, C * 4)) // 8 * 8)
    per_split = -(-N // num_splits)
    per_split_pad = -(-per_split // 8) * 8
    tile_b = int(max(8, min(rows_by_bytes, max_tile_b, per_split_pad)))
    tile_b = (tile_b // 8) * 8

    total_tiles = -(-N // tile_b)                       # tiles needed to cover N
    tiles_per_split = -(-total_tiles // num_splits)
    num_splits = -(-total_tiles // tiles_per_split)     # drop empty splits
    last_block = total_tiles - 1

    # Pad ONLY the tiny targets array (so its blocks are never ragged). The
    # big logits stay unpadded; the clamped index_map + in-kernel row mask
    # make duplicated/ragged trailing blocks contribute exactly 0.
    tgt_rows = total_tiles * tile_b
    if tgt_rows != N:
        target2d = jnp.pad(target2d, ((0, tgt_rows - N), (0, 0)))

    def blk(i, j):
        return (jnp.minimum(i * tiles_per_split + j, last_block), 0)

    kernel = functools.partial(
        _wlsce_kernel, smoothing=float(smoothing), confidence=float(confidence),
        total_n=N, tile_b=tile_b, tiles_per_split=tiles_per_split,
        use_weight=use_weight, native_gather=native_gather)

    partials = pl.pallas_call(
        kernel,
        out_shape=jax.ShapeDtypeStruct((num_splits, 1, 1), jnp.float32),
        grid_spec=pltpu.PrefetchScalarGridSpec(
            num_scalar_prefetch=0,
            grid=(num_splits, tiles_per_split),
            in_specs=[
                pl.BlockSpec((tile_b, C), blk),              # logits tile
                pl.BlockSpec((tile_b, 1), blk),              # targets tile
                pl.BlockSpec((1, C), lambda i, j: (0, 0)),   # class weights (resident)
            ],
            out_specs=pl.BlockSpec((1, 1, 1), lambda i, j: (i, 0, 0)),
            scratch_shapes=[pltpu.VMEM((1, 1), jnp.float32)],
        ),
        compiler_params=pltpu.CompilerParams(
            dimension_semantics=("parallel", "arbitrary"),
            vmem_limit_bytes=int(vmem_limit_bytes)),
    )(x, target2d, weight2d)

    # Cross-split reduce + mean. Matches torch `loss.mean()` (divide by N).
    return jnp.sum(partials) / jnp.float32(N)


def _reference(x, target, weight, smoothing):
    logprobs = jax.nn.log_softmax(x.astype(jnp.float32), axis=-1)
    nll = -jnp.take_along_axis(logprobs, target[:, None], axis=-1)[:, 0]
    smooth = -jnp.mean(logprobs, axis=-1)
    loss = (1.0 - smoothing) * nll + smoothing * smooth
    if weight is not None:
        loss = loss * weight[target]
    return jnp.mean(loss)


if __name__ == "__main__":
    key = jax.random.PRNGKey(0)
    kx, kt = jax.random.split(key)

    # Weighted case.
    N, C = 16, 32
    x = jax.random.normal(kx, (N, C), jnp.float32)
    target = jax.random.randint(kt, (N,), 0, C, jnp.int32)
    weight = 0.5 + jnp.arange(C, dtype=jnp.float32) / C
    out = jax.block_until_ready(
        weighted_label_smoothing_cross_entropy(x, target, weight, smoothing=0.1))
    ref = _reference(x, target, weight, 0.1)
    assert jnp.allclose(out, ref, atol=1e-5, rtol=1e-5), (out, ref)

    # Non-divisible batch + no class weights: exercises the unpadded-logits
    # ragged-last-block + in-kernel row-mask path.
    N2, C2 = 13, 40
    x2 = jax.random.normal(jax.random.PRNGKey(1), (N2, C2), jnp.float32)
    t2 = jax.random.randint(jax.random.PRNGKey(2), (N2,), 0, C2, jnp.int32)
    out2 = jax.block_until_ready(
        weighted_label_smoothing_cross_entropy(x2, t2, None, smoothing=0.1))
    ref2 = _reference(x2, t2, None, 0.1)
    assert jnp.allclose(out2, ref2, atol=1e-5, rtol=1e-5), (out2, ref2)

    # Force the 2-split (v7x-style) grid on any chip + bf16 logits.
    x3 = x2.astype(jnp.bfloat16)
    out3 = jax.block_until_ready(
        weighted_label_smoothing_cross_entropy(x3, t2, None, smoothing=0.1,
                                               num_splits=2))
    ref3 = _reference(x3.astype(jnp.float32), t2, None, 0.1)
    assert jnp.allclose(out3, ref3, atol=1e-4, rtol=1e-4), (out3, ref3)

    print("KERNEL_OK")
</pallas_src>

<mosaic_0001>
module attributes {stable_mosaic.version = 11 : i64} {
  func.func @_wlsce_kernel(%arg0: i32, %arg1: i32, %arg2: memref<16x32xf32, #tpu.memory_space<vmem>>, %arg3: memref<16x1xi32, #tpu.memory_space<vmem>>, %arg4: memref<1x32xf32, #tpu.memory_space<vmem>>, %arg5: memref<1x1x1xf32, #tpu.memory_space<vmem>>, %arg6: memref<1x1xf32, #tpu.memory_space<vmem>>) attributes {dimension_semantics = [#tpu.dimension_semantics<parallel>, #tpu.dimension_semantics<arbitrary>], iteration_bounds = array<i64: 1, 1>, scalar_prefetch = 0 : i64, scratch_operands = 1 : i64, tpu.core_type = #tpu.core_type<tc>, window_params = [{transform_indices = @transform_0, window_bounds = array<i64: 16, 32>}, {transform_indices = @transform_1, window_bounds = array<i64: 16, 1>}, {pipeline_mode = #tpu.pipeline_mode<synchronous>, transform_indices = @transform_2, window_bounds = array<i64: 1, 32>}, {transform_indices = @transform_3, window_bounds = array<i64: 1, 1, 1>}]} {
    %c0_i32 = arith.constant 0 : i32
    %0 = arith.cmpi eq, %arg1, %c0_i32 : i32
    %1 = arith.extui %0 : i1 to i32
    %c0_i32_0 = arith.constant 0 : i32
    %2 = arith.cmpi ne, %1, %c0_i32_0 : i32
    scf.if %2 {
      %cst_24 = arith.constant 0.000000e+00 : f32
      %57 = vector.broadcast %cst_24 : f32 to vector<1x1xf32>
      %c0_25 = arith.constant 0 : index
      %c0_26 = arith.constant 0 : index
      %58 = vector.load %arg6[%c0_25, %c0_26] : memref<1x1xf32, #tpu.memory_space<vmem>>, vector<1x1xf32>
      tpu.vector_store %arg6[%c0_25, %c0_26], %57 {strides = array<i32>} : memref<1x1xf32, #tpu.memory_space<vmem>>, vector<1x1xf32>,
    } else {
    }
    %c0 = arith.constant 0 : index
    %c0_1 = arith.constant 0 : index
    %3 = vector.load %arg2[%c0, %c0_1] : memref<16x32xf32, #tpu.memory_space<vmem>>, vector<16x32xf32>
    %c0_2 = arith.constant 0 : index
    %c0_3 = arith.constant 0 : index
    %4 = vector.load %arg3[%c0_2, %c0_3] : memref<16x1xi32, #tpu.memory_space<vmem>>, vector<16x1xi32>
    %5 = tpu.iota {dimensions = array<i32: 1>} : vector<16x32xi32>
    %6 = vector.broadcast %4 : vector<16x1xi32> to vector<16x32xi32>
    %7 = arith.cmpi eq, %5, %6 : vector<16x32xi32>
    %cst = arith.constant dense<0xFF800000> : vector<16xf32>
    %8 = vector.multi_reduction <maximumf>, %3, %cst [1] : vector<16x32xf32> to vector<16xf32>
    %9 = vector.shape_cast %8 : vector<16xf32> to vector<16x1xf32>
    %cst_4 = arith.constant 0.000000e+00 : f32
    %10 = vector.broadcast %cst_4 : f32 to vector<16x32xf32>
    %11 = arith.select %7, %3, %10 : vector<16x32xi1>, vector<16x32xf32>
    %cst_5 = arith.constant dense<0.000000e+00> : vector<16xf32>
    %12 = vector.multi_reduction <add>, %11, %cst_5 [1] : vector<16x32xf32> to vector<16xf32>
    %13 = vector.shape_cast %12 : vector<16xf32> to vector<16x1xf32>
    %14 = vector.broadcast %9 : vector<16x1xf32> to vector<16x32xf32>
    %15 = arith.subf %3, %14 : vector<16x32xf32>
    %16 = math.exp %15 : vector<16x32xf32>
    %cst_6 = arith.constant dense<0.000000e+00> : vector<16xf32>
    %17 = vector.multi_reduction <add>, %16, %cst_6 [1] : vector<16x32xf32> to vector<16xf32>
    %18 = vector.shape_cast %17 : vector<16xf32> to vector<16x1xf32>
    %19 = math.log %18 : vector<16x1xf32>
    %20 = arith.addf %9, %19 : vector<16x1xf32>
    %cst_7 = arith.constant dense<0.000000e+00> : vector<16xf32>
    %21 = vector.multi_reduction <add>, %3, %cst_7 [1] : vector<16x32xf32> to vector<16xf32>
    %22 = vector.shape_cast %21 : vector<16xf32> to vector<16x1xf32>
    %cst_8 = arith.constant 3.125000e-02 : f32
    %23 = vector.broadcast %cst_8 : f32 to vector<16x1xf32>
    %24 = arith.mulf %22, %23 : vector<16x1xf32>
    %cst_9 = arith.constant 0.899999976 : f32
    %25 = vector.broadcast %cst_9 : f32 to vector<16x1xf32>
    %26 = arith.mulf %25, %13 : vector<16x1xf32>
    %27 = arith.subf %20, %26 : vector<16x1xf32>
    %cst_10 = arith.constant 1.000000e-01 : f32
    %28 = vector.broadcast %cst_10 : f32 to vector<16x1xf32>
    %29 = arith.mulf %28, %24 : vector<16x1xf32>
    %30 = arith.subf %27, %29 : vector<16x1xf32>
    %c0_11 = arith.constant 0 : index
    %c0_12 = arith.constant 0 : index
    %31 = vector.load %arg4[%c0_11, %c0_12] : memref<1x32xf32, #tpu.memory_space<vmem>>, vector<1x32xf32>
    %cst_13 = arith.constant 0.000000e+00 : f32
    %32 = vector.shape_cast %31 : vector<1x32xf32> to vector<1x32xf32>
    %33 = vector.broadcast %32 : vector<1x32xf32> to vector<16x32xf32>
    %34 = vector.broadcast %cst_13 : f32 to vector<16x32xf32>
    %35 = arith.select %7, %33, %34 : vector<16x32xi1>, vector<16x32xf32>
    %cst_14 = arith.constant dense<0.000000e+00> : vector<16xf32>
    %36 = vector.multi_reduction <add>, %35, %cst_14 [1] : vector<16x32xf32> to vector<16xf32>
    %37 = vector.shape_cast %36 : vector<16xf32> to vector<16x1xf32>
    %38 = arith.mulf %30, %37 : vector<16x1xf32>
    %39 = tpu.iota {dimensions = array<i32: 0>} : vector<16x1xi32>
    %c1_i32 = arith.constant 1 : i32
    %40 = arith.muli %arg0, %c1_i32 : i32
    %41 = arith.addi %40, %arg1 : i32
    %c16_i32 = arith.constant 16 : i32
    %42 = arith.muli %41, %c16_i32 : i32
    %43 = vector.broadcast %42 : i32 to vector<16x1xi32>
    %44 = arith.addi %43, %39 : vector<16x1xi32>
    %c16_i32_15 = arith.constant 16 : i32
    %45 = vector.broadcast %c16_i32_15 : i32 to vector<16x1xi32>
    %46 = arith.cmpi slt, %44, %45 : vector<16x1xi32>
    %cst_16 = arith.constant 0.000000e+00 : f32
    %47 = vector.broadcast %cst_16 : f32 to vector<16x1xf32>
    %48 = arith.select %46, %38, %47 : vector<16x1xi1>, vector<16x1xf32>
    %c0_17 = arith.constant 0 : index
    %c0_18 = arith.constant 0 : index
    %49 = vector.load %arg6[%c0_17, %c0_18] : memref<1x1xf32, #tpu.memory_space<vmem>>, vector<1x1xf32>
    %cst_19 = arith.constant dense<0.000000e+00> : vector<1xf32>
    %50 = vector.multi_reduction <add>, %48, %cst_19 [0] : vector<16x1xf32> to vector<1xf32>
    %51 = vector.shape_cast %50 : vector<1xf32> to vector<1x1xf32>
    %52 = arith.addf %49, %51 : vector<1x1xf32>
    %c0_20 = arith.constant 0 : index
    %c0_21 = arith.constant 0 : index
    %53 = vector.load %arg6[%c0_20, %c0_21] : memref<1x1xf32, #tpu.memory_space<vmem>>, vector<1x1xf32>
    tpu.vector_store %arg6[%c0_20, %c0_21], %52 {strides = array<i32>} : memref<1x1xf32, #tpu.memory_space<vmem>>, vector<1x1xf32>,
    %c0_i32_22 = arith.constant 0 : i32
    %54 = arith.cmpi eq, %arg1, %c0_i32_22 : i32
    %55 = arith.extui %54 : i1 to i32
    %c0_i32_23 = arith.constant 0 : i32
    %56 = arith.cmpi ne, %55, %c0_i32_23 : i32
    scf.if %56 {
      %c0_24 = arith.constant 0 : index
      %c0_25 = arith.constant 0 : index
      %57 = vector.load %arg6[%c0_24, %c0_25] : memref<1x1xf32, #tpu.memory_space<vmem>>, vector<1x1xf32>
      %58 = vector.shape_cast %57 : vector<1x1xf32> to vector<1x1x1xf32>
      %c0_26 = arith.constant 0 : index
      %c0_27 = arith.constant 0 : index
      %c0_28 = arith.constant 0 : index
      %59 = vector.load %arg5[%c0_26, %c0_27, %c0_28] : memref<1x1x1xf32, #tpu.memory_space<vmem>>, vector<1x1x1xf32>
      tpu.vector_store %arg5[%c0_26, %c0_27, %c0_28], %58 {strides = array<i32>} : memref<1x1x1xf32, #tpu.memory_space<vmem>>, vector<1x1x1xf32>,
    } else {
    }
    return
  }
  func.func @transform_0(%arg0: i32, %arg1: i32) -> (i32, i32) {
    %c1_i32 = arith.constant 1 : i32
    %0 = arith.muli %arg0, %c1_i32 : i32
    %1 = arith.addi %0, %arg1 : i32
    %c0_i32 = arith.constant 0 : i32
    %2 = arith.minsi %1, %c0_i32 : i32
    %c0_i32_0 = arith.constant 0 : i32
    %c0_i32_1 = arith.constant 0 : i32
    return %2, %c0_i32_0 : i32, i32
  }
  func.func @transform_1(%arg0: i32, %arg1: i32) -> (i32, i32) {
    %c1_i32 = arith.constant 1 : i32
    %0 = arith.muli %arg0, %c1_i32 : i32
    %1 = arith.addi %0, %arg1 : i32
    %c0_i32 = arith.constant 0 : i32
    %2 = arith.minsi %1, %c0_i32 : i32
    %c0_i32_0 = arith.constant 0 : i32
    %c0_i32_1 = arith.constant 0 : i32
    return %2, %c0_i32_0 : i32, i32
  }
  func.func @transform_2(%arg0: i32, %arg1: i32) -> (i32, i32) {
    %c0_i32 = arith.constant 0 : i32
    %c0_i32_0 = arith.constant 0 : i32
    %c0_i32_1 = arith.constant 0 : i32
    return %c0_i32, %c0_i32_0 : i32, i32
  }
  func.func @transform_3(%arg0: i32, %arg1: i32) -> (i32, i32, i32) {
    %c0_i32 = arith.constant 0 : i32
    %c0_i32_0 = arith.constant 0 : i32
    %c0_i32_1 = arith.constant 0 : i32
    return %arg0, %c0_i32, %c0_i32_0 : i32, i32, i32
  }
}

</mosaic_0001>

<llo_original>
// kernel: tpu_custom_call.1
$region0: #{tpu_custom_call.1}
  #allocation0 [shape = 'u32[]', space=smem, size = 0x4, offset = 0x4, fixed_abs, tag = 'smem constant byte address 0x4 - core index']
  #allocation1 [shape = 'u32[72,128]{1,0:T(1,128)}', space=vmem, size = 0x9000, scoped, tag = 'internal scratch']
  #allocation2 [shape = 'f32[1,1]{1,0:T(1,128)}', space=vmem, size = 0x200, scoped, tag = 'scratch operand']
  %s0 = inlined_call_operand.vmem [shape: f32[16,32], index: 0, kind: input, shape index: {}]
  %s1 = inlined_call_operand.vmem [shape: s32[16,1], index: 1, kind: input, shape index: {}]
  %s2 = inlined_call_operand.vmem [shape: f32[1,32], index: 2, kind: input, shape index: {}]
  %s3 = inlined_call_operand.hbm [shape: f32[1,1,1], index: 3, kind: output, shape index: {}]
  %s4 = sld [smem:[#allocation0]]
  $region30: #{tpu_custom_call.1} parent=0
    _
  %s6 = ssub.s32 1, %s4
  %s7 = scalar_select 0, %s6, %s4
  $region1: #{tpu_custom_call.1} parent=0
    #allocation3 [shape = 'u8[512]{0}', space=vmem, size = 0x400, scoped, tag = 'output window, operand 0, single buffered']
    #allocation4 [shape = 's32[1]{0}', space=sflag, size = 0x4, scoped, tag = 'scoped memory for tpu_custom_call.1']
    %8 = vsyncpa [#allocation4], 0
    // Predicated region
    $region2: #{tpu_custom_call.1} parent=1 // pred_check
      _
    $region3: #{tpu_custom_call.1} parent=1 // pred_check_branch
      %10 = sbr.rel (0) target = $region5
    $region4: #{tpu_custom_call.1} parent=1 // pred_region
      %s11 = sadd.s32 0, 0
      %p12 = scmp.lt.s32.totalorder %s11, 0
      %s13 = scalar_select %p12, %s11, 0
      %s14 = smul.u32 2, %s13
      %p15 = scmp.lt.s32.totalorder %s14, 1
      %s16 = scalar_select %p15, %s14, 1
      %s17 = smul.addr %s16, 8
      %s18 = scalar_lea.vmem %s0, %s17
      %s19 = sadd.s32 0, 0
      %p20 = scmp.lt.s32.totalorder %s19, 0
      %s21 = scalar_select %p20, %s19, 0
      %s22 = smul.u32 2, %s21
    $region5: #{tpu_custom_call.1} parent=1 // pred_fallthru
      _
    // Predicated region
    $region6: #{tpu_custom_call.1} parent=1 // pred_check
      _
    $region7: #{tpu_custom_call.1} parent=1 // pred_check_branch
      %24 = sbr.rel (0) target = $region9
    $region8: #{tpu_custom_call.1} parent=1 // pred_region
      %s25 = sadd.s32 0, 0
      %p26 = scmp.lt.s32.totalorder %s25, 0
      %s27 = scalar_select %p26, %s25, 0
      %s28 = smul.u32 2, %s27
      %p29 = scmp.lt.s32.totalorder %s28, 1
      %s30 = scalar_select %p29, %s28, 1
      %s31 = smul.addr %s30, 8
      %s32 = scalar_lea.vmem %s1, %s31
      %s33 = sadd.s32 0, 0
      %p34 = scmp.lt.s32.totalorder %s33, 0
      %s35 = scalar_select %p34, %s33, 0
      %s36 = smul.u32 2, %s35
    $region9: #{tpu_custom_call.1} parent=1 // pred_fallthru
      _
    // Predicated region
    $region10: #{tpu_custom_call.1} parent=1 // pred_check
      _
    $region11: #{tpu_custom_call.1} parent=1 // pred_check_branch
      %38 = sbr.rel (0) target = $region13
    $region12: #{tpu_custom_call.1} parent=1 // pred_region
      _
    $region13: #{tpu_custom_call.1} parent=1 // pred_fallthru
      _
    %s39 = sadd.s32 0, 0
    %p40 = scmp.lt.s32.totalorder %s39, 0
    %s41 = scalar_select %p40, %s39, 0
    %s42 = smul.u32 2, %s41
    %p43 = scmp.lt.s32.totalorder %s42, 1
    %s44 = scalar_select %p43, %s42, 1
    %s45 = smul.addr %s44, 8
    %s46 = scalar_lea.vmem %s0, %s45
    %s47 = sadd.s32 0, 0
    %p48 = scmp.lt.s32.totalorder %s47, 0
    %s49 = scalar_select %p48, %s47, 0
    %s50 = smul.u32 2, %s49
    %p51 = scmp.lt.s32.totalorder %s50, 1
    %s52 = scalar_select %p51, %s50, 1
    %s53 = smul.addr %s52, 8
    %s54 = scalar_lea.vmem %s1, %s53
    %s55 = sadd.s32 0, 0
    %p56 = scmp.lt.s32.totalorder %s55, 0
    %s57 = scalar_select %p56, %s55, 0
    %s58 = smul.u32 2, %s57
    %p59 = scmp.lt.s32.totalorder %s58, 1
    %s60 = scalar_select %p59, %s58, 1
    %s61 = smul.addr %s60, 8
    %s62 = scalar_lea.vmem %s0, %s61
    %s63 = sadd.s32 0, 0
    %p64 = scmp.lt.s32.totalorder %s63, 0
    %s65 = scalar_select %p64, %s63, 0
    %s66 = smul.u32 2, %s65
    %s67 = sadd.s32 0, 0
    %p68 = scmp.lt.s32.totalorder %s67, 0
    %s69 = scalar_select %p68, %s67, 0
    %s70 = smul.u32 2, %s69
    %p71 = scmp.lt.s32.totalorder %s70, 1
    %s72 = scalar_select %p71, %s70, 1
    %s73 = smul.addr %s72, 8
    %s74 = scalar_lea.vmem %s1, %s73
    %s75 = sadd.s32 0, 0
    %p76 = scmp.lt.s32.totalorder %s75, 0
    %s77 = scalar_select %p76, %s75, 0
    %s78 = smul.u32 2, %s77
    %p79 = scmp.eq.s32.totalorder 0, 0
    // Predicated region
    $region14: #{tpu_custom_call.1} parent=1 // pred_check
      %p80 = pneg %p79
    $region15: #{tpu_custom_call.1} parent=1 // pred_check_branch
      %82 = sbr.rel (%p80) target = $region17
    $region16: #{tpu_custom_call.1} parent=1 // pred_region
      %vm83 = vcmask 0
      %84 = vst.msk [vmem:[#allocation2] sm:$0x1] %vm83, 0.0
    $region17: #{tpu_custom_call.1} parent=1 // pred_fallthru
      _
    %v85 = vld [vmem:[%s62] sm:$0xff]
    %v86 = vld [vmem:[%s62 + $0x8] sm:$0xff]
    %v87 = vld [vmem:[%s74] sm:$0xff]
    %v88 = vld [vmem:[%s74 + $0x8] sm:$0xff]
    %v89 = vlaneseq
    %v90 = vand.u32 %v89, 127
    %91 = vset.pattern.permute.xlu0 0
    %92 = vperm.xlu0 %91, %v87
    %v93 = vpop.permute.xlu0 %92
    %94 = vset.pattern.permute.xlu0 0
    %95 = vperm.xlu0 %94, %v88
    %v96 = vpop.permute.xlu0 %95
    %vm97 = vcmp.eq.s32.totalorder %v90, %v93
    %vm98 = vcmp.eq.s32.totalorder %v90, %v96
    %vm99 = vcmask 261120
    %v100 = vsel %vm99, %v85, -inf
    %101 = vmax.xlane.f32.xlu0 %v100
    %v102 = vpop.xlane.xlu0 %101
    %v103 = vsel %vm99, %v86, -inf
    %104 = vmax.xlane.f32.xlu0 %v103
    %v105 = vpop.xlane.xlu0 %104
    %v106 = vsel %vm97, %v85, 0.0
    %v107 = vsel %vm98, %v86, 0.0
    %v108 = vsel %vm99, %v106, 0.0
    %109 = vadd.xlane.f32.xlu0 %v108
    %v110 = vpop.xlane.xlu0 %109
    %v111 = vsel %vm99, %v107, 0.0
    %112 = vadd.xlane.f32.xlu0 %v111
    %v113 = vpop.xlane.xlu0 %112
    %v114 = vsub.f32 %v85, %v102
    %v115 = vsub.f32 %v86, %v105
    %v116 = vmul.f32 %v114, 1.442695
    %v117 = vpow.pop %v116
    %v118 = vmul.f32 %v115, 1.442695
    %v119 = vpow.pop %v118
    %v120 = vsel %vm99, %v117, 0.0
    %121 = vadd.xlane.f32.xlu0 %v120
    %v122 = vpop.xlane.xlu0 %121
    %v123 = vsel %vm99, %v119, 0.0
    %124 = vadd.xlane.f32.xlu0 %v123
    %v125 = vpop.xlane.xlu0 %124
    %v126 = vlog2.pop %v122
    %v127 = vmul.f32 %v126, 0.6931472
    %v128 = vlog2.pop %v125
    %v129 = vmul.f32 %v128, 0.6931472
    %v130 = vadd.f32 %v102, %v127
    %v131 = vadd.f32 %v105, %v129
    %v132 = vsel %vm99, %v85, 0.0
    %133 = vadd.xlane.f32.xlu0 %v132
    %v134 = vpop.xlane.xlu0 %133
    %v135 = vsel %vm99, %v86, 0.0
    %136 = vadd.xlane.f32.xlu0 %v135
    %v137 = vpop.xlane.xlu0 %136
    %v138 = vmul.f32 %v134, 0.03125
    %v139 = vmul.f32 %v137, 0.03125
    %v140 = vmul.f32 %v110, 0.9
    %v141 = vmul.f32 %v113, 0.9
    %v142 = vsub.f32 %v130, %v140
    %v143 = vsub.f32 %v131, %v141
    %v144 = vmul.f32 %v138, 0.1
    %v145 = vmul.f32 %v139, 0.1
    %v146 = vsub.f32 %v142, %v144
    %v147 = vsub.f32 %v143, %v145
    %v148 = vld [vmem:[%s2] sm:$0x1]
    %v150 = vperm.slane %v148, 0
    %v152 = vsel %vm97, %v150, 0.0
    %v153 = vsel %vm98, %v150, 0.0
    %v154 = vsel %vm99, %v152, 0.0
    %155 = vadd.xlane.f32.xlu0 %v154
    %v156 = vpop.xlane.xlu0 %155
    %v157 = vsel %vm99, %v153, 0.0
    %158 = vadd.xlane.f32.xlu0 %v157
    %v159 = vpop.xlane.xlu0 %158
    %v160 = vmul.f32 %v146, %v156
    %v161 = vmul.f32 %v147, %v159
    %v162 = vlaneseq
    %v163 = vshrl.u32 %v162, 7
    %v164 = vadd.s32 %v163, 8
    %s165 = sadd.s32 0, 0
    %s166 = smul.u32 %s165, 16
    %v167 = vstv %s166
    %v168 = vadd.s32 %v167, %v163
    %v169 = vadd.s32 %v167, %v164
    %vm170 = vcmp.lt.s32.totalorder %v168, 16
    %vm171 = vcmp.lt.s32.totalorder %v169, 16
    %v172 = vsel %vm170, %v160, 0.0
    %v173 = vsel %vm171, %v161, 0.0
    %v174 = vld [vmem:[#allocation2] sm:$0x1]
    %v175 = vadd.f32 %v172, %v173
    %v176 = vrot.slane %v175, 4
    %v177 = vadd.f32 %v175, %v176
    %v178 = vrot.slane %v177, 2
    %v179 = vadd.f32 %v177, %v178
    %v180 = vrot.slane %v179, 1
    %v181 = vadd.f32 %v179, %v180
    %v182 = vadd.f32 %v174, %v181
    %vm183 = vcmask 0
    %184 = vst.msk [vmem:[#allocation2] sm:$0x1] %vm183, %v182
    // Predicated region
    $region18: #{tpu_custom_call.1} parent=1 // pred_check
      %p185 = pneg %p79
    $region19: #{tpu_custom_call.1} parent=1 // pred_check_branch
      %187 = sbr.rel (%p185) target = $region21
    $region20: #{tpu_custom_call.1} parent=1 // pred_region
      %v188 = vld [vmem:[#allocation2] sm:$0x1]
      %189 = vst.msk [vmem:[#allocation3] sm:$0x1] %vm183, %v188
    $region21: #{tpu_custom_call.1} parent=1 // pred_fallthru
      _
    // Predicated region
    $region22: #{tpu_custom_call.1} parent=1 // pred_check
      _
    $region23: #{tpu_custom_call.1} parent=1 // pred_check_branch
      %191 = sbr.rel (0) target = $region25
    $region24: #{tpu_custom_call.1} parent=1 // pred_region
      %193 = vsyncadd [#allocation4], 0
      %s195 = sshll.u32 [#allocation3], 4
      %s196 = int_to_ptr.vmem [resolvable:$true] %s195
      %s197 = sshll.u32 %s3, 4
      %s198 = int_to_ptr.hbm [resolvable:$true] %s197
      %200 = dma.vmem_to_hbm [thread:$0]  %s196, 16, %s198, [#allocation4]
    $region25: #{tpu_custom_call.1} parent=1 // pred_fallthru
      _
    // Predicated region
    $region26: #{tpu_custom_call.1} parent=1 // pred_check
      _
    $region27: #{tpu_custom_call.1} parent=1 // pred_check_branch
      %202 = sbr.rel (0) target = $region29
    $region28: #{tpu_custom_call.1} parent=1 // pred_region
      %204 = dma.done [#allocation4], 16
    $region29: #{tpu_custom_call.1} parent=1 // pred_fallthru
      _
    %205 = vsyncpa [#allocation4], 1

</llo_original>
